<compile_context>
chip_gen: v7x
topology: tpu7x:2x2x1
jax: 0.10.0
libtpu: 0.0.40
codegen_flags: <defaults>
</compile_context>

<pallas_src>
import functools

import jax
import jax.numpy as jnp
from jax.experimental import pallas as pl
from jax.experimental.pallas import tpu as pltpu


def _round_up(x, m):
    return ((x + m - 1) // m) * m


def _tpu_info():
    """Returns (vmem_capacity_bytes, num_tensorcores, mxu_dim), conservative defaults."""
    vmem_cap, num_tc, mxu = 64 << 20, 1, 128          # safe on any generation
    try:
        kind = jax.devices()[0].device_kind.lower()
        if "v7" in kind:
            vmem_cap, num_tc, mxu = 64 << 20, 2, 256   # 64 MiB/TC, 2 TCs, 2x256^2 MXU
        elif "v6" in kind:
            vmem_cap, num_tc, mxu = 128 << 20, 1, 256
        elif "v5" in kind:
            if "lite" in kind or "v5e" in kind:
                vmem_cap, num_tc, mxu = 128 << 20, 1, 128   # v5e
            else:
                vmem_cap, num_tc, mxu = 128 << 20, 2, 128   # v5p megacore
        elif "v4" in kind:
            vmem_cap, num_tc, mxu = 128 << 20, 2, 128
        elif "v3" in kind or "v2" in kind:
            vmem_cap, num_tc, mxu = 16 << 20, 2, 128
    except Exception:
        pass
    try:  # prefer the real number if the query is available
        cap = getattr(pltpu.get_tpu_info(), "vmem_capacity_bytes", None)
        if cap:
            vmem_cap = int(cap)
    except Exception:
        pass
    return vmem_cap, num_tc, mxu


def _choose_batch_tile(batch, block_batch, num_tc):
    """Pick (batch_tile, padded_batch).

    Prefers a tile that divides batch (avoids a full jnp.pad copy of x) and, on
    multi-TensorCore chips, guarantees >= num_tc grid steps when batch permits.
    """
    cap = max(8, block_batch)
    if num_tc > 1 and batch >= 16:
        half = max(8, _round_up(-(-batch // num_tc), 8))
        cap = min(cap, half)
    if batch <= cap:
        return batch, batch                       # one full-batch tile, no pad
    tile_cap = (cap // 8) * 8
    for t in range(tile_cap, 7, -8):              # largest mult-of-8 divisor of batch
        if batch % t == 0:
            return t, batch
    return tile_cap, _round_up(batch, tile_cap)


def _block_spec(shape, index_map, buffer_count=None):
    if buffer_count is None:
        return pl.BlockSpec(shape, index_map)
    return pl.BlockSpec(shape, index_map, pipeline_mode=pl.Buffered(buffer_count))


# --------------------------------------------------------------------------
# Fused path: all weights resident in VMEM, grid over the batch only.
# --------------------------------------------------------------------------
def _fusion_kernel(n_hidden, *refs):
    """refs = (x_ref, w0, b0, w1, b1, ..., w_final, b_final, out_ref)."""
    x_ref = refs[0]
    out_ref = refs[-1]
    params = refs[1:-1]

    h = x_ref[...].astype(jnp.bfloat16)           # bf16 MXU inputs, f32 accumulation

    for i in range(n_hidden):                     # Linear -> Dropout(id) -> ReLU
        w = params[2 * i][...]                    # (in_p, out_p) bf16
        b = params[2 * i + 1][...]                # (1, out_p) f32, broadcasts
        y = jnp.dot(h, w, preferred_element_type=jnp.float32) + b
        h = jnp.maximum(y, 0.0).astype(jnp.bfloat16)

    wf = params[-2][...]
    bf = params[-1][...]
    out_ref[...] = (jnp.dot(h, wf, preferred_element_type=jnp.float32)
                    + bf).astype(out_ref.dtype)


# --------------------------------------------------------------------------
# Streaming fallback: one Linear(+ReLU) per pallas_call, weight N-chunks
# streamed through the pipeline (used when params don't fit resident in VMEM).
# --------------------------------------------------------------------------
def _linear_kernel(apply_relu, x_ref, w_ref, b_ref, o_ref):
    y = jnp.dot(x_ref[...].astype(jnp.bfloat16), w_ref[...],
                preferred_element_type=jnp.float32) + b_ref[...]
    if apply_relu:
        y = jnp.maximum(y, 0.0)
    o_ref[...] = y.astype(o_ref.dtype)


def _linear_streamed(x, w, b_row, apply_relu, out_dtype, tm, vmem_cap):
    M, K = x.shape
    N = w.shape[1]
    tn = N
    for cand in (512, 384, 256, 128):
        if N % cand == 0:
            tn = cand
            break
    grid = (M // tm, N // tn)
    vmem_bytes = int(min(max(
        2 * tm * K * x.dtype.itemsize + 2 * K * tn * 2 + 2 * tm * tn * 4
        + tm * max(K, tn) * 6 + (2 << 20), 8 << 20), int(vmem_cap * 0.85)))
    return pl.pallas_call(
        functools.partial(_linear_kernel, apply_relu),
        out_shape=jax.ShapeDtypeStruct((M, N), out_dtype),
        grid=grid,
        in_specs=[
            pl.BlockSpec((tm, K), lambda i, j: (i, 0)),
            pl.BlockSpec((K, tn), lambda i, j: (0, j)),
            pl.BlockSpec((1, tn), lambda i, j: (0, j)),
        ],
        out_specs=pl.BlockSpec((tm, tn), lambda i, j: (i, j)),
        compiler_params=pltpu.CompilerParams(
            dimension_semantics=("parallel", "parallel"),
            vmem_limit_bytes=vmem_bytes,
        ),
    )(x, w, b_row)


# --------------------------------------------------------------------------
# Public wrapper
# --------------------------------------------------------------------------
def fusion_forward(x, weights, biases, *, block_batch=512, feature_granule=None,
                   force_stream=False):
    """Runs the fused MLP as Pallas TPU kernel(s), tiled over the batch.

    Args:
      x:        (batch, input_dim) float32
      weights:  list of (in_i, out_i) float32 arrays (transposed vs torch)
      biases:   list of (out_i,) float32 arrays
    Returns:
      (out, feat) matching the PyTorch module: out is (batch, output_dim) f32,
      feat is an empty list.  Dropout = inference identity.
    """
    n_layers = len(weights)
    n_hidden = n_layers - 1
    batch, input_dim = x.shape
    out_dim = weights[-1].shape[1]

    vmem_cap, num_tc, mxu = _tpu_info()
    granule = feature_granule if feature_granule else mxu

    # ---- feature padding: every dim to an MXU granule (exact w/ zeros) -------
    dims = [input_dim] + [w.shape[1] for w in weights]
    dims_p = [_round_up(d, granule) for d in dims]
    if out_dim < 128:
        # tiny head: masked vst on out_dim lanes beats 16-32x write inflation
        dims_p[-1] = out_dim
    in_dim_p, out_dim_blk = dims_p[0], dims_p[-1]

    flat_params, param_bytes = [], 0
    for li, (w, b) in enumerate(zip(weights, biases)):
        d_in, d_out = w.shape
        d_in_p, d_out_p = dims_p[li], dims_p[li + 1]
        w_p = jnp.pad(w, ((0, d_in_p - d_in), (0, d_out_p - d_out))).astype(jnp.bfloat16)
        b_p = jnp.pad(b, (0, d_out_p - d_out)).astype(jnp.float32).reshape(1, -1)
        flat_params += [w_p, b_p]
        param_bytes += d_in_p * d_out_p * 2 + d_out_p * 4

    # ---- batch tiling (divisor-of-batch preferred; split across TCs) ---------
    tm, batch_p = _choose_batch_tile(batch, block_batch, num_tc)
    grid_m = batch_p // tm
    pad_rows, pad_cols = batch_p - batch, in_dim_p - input_dim
    x_p = jnp.pad(x, ((0, pad_rows), (0, pad_cols))) if (pad_rows or pad_cols) else x

    max_dim_p = max(dims_p)
    # f32 y + bf16 h per live layer (x2 margin) + bf16 copy of the x tile
    act_bytes = 2 * tm * max_dim_p * 6 + tm * in_dim_p * 2

    # ---- fallback: stream weights if they can't sit resident in VMEM ---------
    if force_stream or param_bytes > int(vmem_cap * 0.55):
        h = x_p
        for li in range(n_layers):
            last = li == n_layers - 1
            h = _linear_streamed(h, flat_params[2 * li], flat_params[2 * li + 1],
                                 apply_relu=not last,
                                 out_dtype=jnp.float32 if last else jnp.bfloat16,
                                 tm=tm, vmem_cap=vmem_cap)
        out_p = h
    else:
        def _run(use_buffer_hints):
            x_buf = 3 if (use_buffer_hints and grid_m >= 4) else None
            p_buf = 1 if use_buffer_hints else None          # constant index_map
            in_specs = [_block_spec((tm, in_dim_p), lambda i: (i, 0), x_buf)]
            for p in flat_params:
                in_specs.append(_block_spec(p.shape, lambda i: (0, 0), p_buf))
            out_specs = pl.BlockSpec((tm, out_dim_blk), lambda i: (i, 0))

            x_factor = x_buf if x_buf else 2
            p_factor = 1 if use_buffer_hints else 2
            vmem_bytes = (x_factor * tm * in_dim_p * 4
                          + 2 * tm * out_dim_blk * 4
                          + p_factor * param_bytes
                          + act_bytes + (2 << 20))
            vmem_bytes = int(min(max(vmem_bytes, 8 << 20), int(vmem_cap * 0.85)))

            return pl.pallas_call(
                functools.partial(_fusion_kernel, n_hidden),
                out_shape=jax.ShapeDtypeStruct((batch_p, out_dim_blk), jnp.float32),
                grid=(grid_m,),
                in_specs=in_specs,
                out_specs=out_specs,
                compiler_params=pltpu.CompilerParams(
                    dimension_semantics=("parallel",),   # megacore on v7x/v5p
                    vmem_limit_bytes=vmem_bytes,
                ),
            )(x_p, *flat_params)

        try:
            out_p = _run(True)
        except Exception:
            # pl.Buffered pipeline hints unsupported in this jax build: rebuild
            # with default (double-buffered) specs.
            out_p = _run(False)

    out = out_p
    if batch_p != batch or out_dim_blk != out_dim:
        out = out[:batch, :out_dim]
    feat = []
    return out, feat


# --------------------------------------------------------------------------
# Deterministic init + pure-JAX reference
# --------------------------------------------------------------------------
def init_fusion_params(key, input_dim, layers, output_dim):
    """PyTorch Linear convention, transposed to (in, out) for y = x @ W + b."""
    dims_in = [input_dim] + list(layers)
    dims_out = list(layers) + [output_dim]
    weights, biases = [], []
    for d_in, d_out in zip(dims_in, dims_out):
        key, wk, bk = jax.random.split(key, 3)
        bound = 1.0 / jnp.sqrt(d_in)
        w = jax.random.uniform(wk, (d_out, d_in), jnp.float32, -bound, bound)
        b = jax.random.uniform(bk, (d_out,), jnp.float32, -bound, bound)
        weights.append(w.T)
        biases.append(b)
    return weights, biases


def fusion_reference(x, weights, biases):
    h = x
    for w, b in zip(weights[:-1], biases[:-1]):
        h = jnp.maximum(h @ w + b, 0.0)
    return h @ weights[-1] + biases[-1]


if __name__ == "__main__":
    key = jax.random.PRNGKey(0)

    batch = 2
    input_dim = 32
    layers = [64, 32]
    output_dim = 8

    key, xk = jax.random.split(key)
    x = jax.random.normal(xk, (batch, input_dim), jnp.float32)
    weights, biases = init_fusion_params(key, input_dim, layers, output_dim)

    ref = fusion_reference(x, weights, biases)

    # Fused (resident-parameter) path.
    out, feat = fusion_forward(x, weights, biases)
    out = jax.block_until_ready(out)
    assert out.shape == (batch, output_dim)
    assert feat == []
    # bf16 MXU inputs with f32 accumulation -> relaxed tolerance vs f32 ref.
    assert jnp.allclose(out, ref, atol=5e-2, rtol=5e-2), (
        f"fused path max abs err {jnp.max(jnp.abs(out - ref))}")

    # Parameter-streaming fallback path (exercised explicitly at small shapes).
    out_s, _ = fusion_forward(x, weights, biases, force_stream=True)
    out_s = jax.block_until_ready(out_s)
    assert out_s.shape == (batch, output_dim)
    assert jnp.allclose(out_s, ref, atol=5e-2, rtol=5e-2), (
        f"streamed path max abs err {jnp.max(jnp.abs(out_s - ref))}")

    print("KERNEL_OK")
</pallas_src>

<mosaic_0001>
module attributes {stable_mosaic.version = 11 : i64} {
  func.func @_fusion_kernel(%arg0: i32, %arg1: memref<2x128xf32, #tpu.memory_space<vmem>>, %arg2: memref<128x128xbf16, #tpu.memory_space<vmem>>, %arg3: memref<1x128xf32, #tpu.memory_space<vmem>>, %arg4: memref<128x128xbf16, #tpu.memory_space<vmem>>, %arg5: memref<1x128xf32, #tpu.memory_space<vmem>>, %arg6: memref<128x8xbf16, #tpu.memory_space<vmem>>, %arg7: memref<1x8xf32, #tpu.memory_space<vmem>>, %arg8: memref<2x8xf32, #tpu.memory_space<vmem>>) attributes {dimension_semantics = [#tpu.dimension_semantics<parallel>], iteration_bounds = array<i64: 1>, scalar_prefetch = 0 : i64, scratch_operands = 0 : i64, tpu.core_type = #tpu.core_type<tc>, window_params = [{transform_indices = @transform_0, window_bounds = array<i64: 2, 128>}, {pipeline_mode = #tpu.pipeline_mode<synchronous>, transform_indices = @transform_1, window_bounds = array<i64: 128, 128>}, {pipeline_mode = #tpu.pipeline_mode<synchronous>, transform_indices = @transform_2, window_bounds = array<i64: 1, 128>}, {pipeline_mode = #tpu.pipeline_mode<synchronous>, transform_indices = @transform_3, window_bounds = array<i64: 128, 128>}, {pipeline_mode = #tpu.pipeline_mode<synchronous>, transform_indices = @transform_4, window_bounds = array<i64: 1, 128>}, {pipeline_mode = #tpu.pipeline_mode<synchronous>, transform_indices = @transform_5, window_bounds = array<i64: 128, 8>}, {pipeline_mode = #tpu.pipeline_mode<synchronous>, transform_indices = @transform_6, window_bounds = array<i64: 1, 8>}, {transform_indices = @transform_7, window_bounds = array<i64: 2, 8>}]} {
    %c0 = arith.constant 0 : index
    %c0_0 = arith.constant 0 : index
    %0 = vector.load %arg1[%c0, %c0_0] : memref<2x128xf32, #tpu.memory_space<vmem>>, vector<2x128xf32>
    %1 = arith.truncf %0 : vector<2x128xf32> to vector<2x128xbf16>
    %c0_1 = arith.constant 0 : index
    %c0_2 = arith.constant 0 : index
    %2 = vector.load %arg2[%c0_1, %c0_2] : memref<128x128xbf16, #tpu.memory_space<vmem>>, vector<128x128xbf16>
    %c0_3 = arith.constant 0 : index
    %c0_4 = arith.constant 0 : index
    %3 = vector.load %arg3[%c0_3, %c0_4] : memref<1x128xf32, #tpu.memory_space<vmem>>, vector<1x128xf32>
    %cst = arith.constant dense<0.000000e+00> : vector<2x128xf32>
    %4 = tpu.matmul %1, %2, %cst {dimension_numbers = #tpu.dot_dimension_numbers<[1], [0], [0], [1], [0, 0, 1, 1], [], []>} : vector<2x128xbf16>, vector<128x128xbf16>, vector<2x128xf32> -> vector<2x128xf32>
    %5 = vector.broadcast %3 : vector<1x128xf32> to vector<2x128xf32>
    %6 = arith.addf %4, %5 : vector<2x128xf32>
    %cst_5 = arith.constant 0.000000e+00 : f32
    %7 = vector.broadcast %cst_5 : f32 to vector<2x128xf32>
    %8 = arith.maximumf %6, %7 : vector<2x128xf32>
    %9 = arith.truncf %8 : vector<2x128xf32> to vector<2x128xbf16>
    %c0_6 = arith.constant 0 : index
    %c0_7 = arith.constant 0 : index
    %10 = vector.load %arg4[%c0_6, %c0_7] : memref<128x128xbf16, #tpu.memory_space<vmem>>, vector<128x128xbf16>
    %c0_8 = arith.constant 0 : index
    %c0_9 = arith.constant 0 : index
    %11 = vector.load %arg5[%c0_8, %c0_9] : memref<1x128xf32, #tpu.memory_space<vmem>>, vector<1x128xf32>
    %cst_10 = arith.constant dense<0.000000e+00> : vector<2x128xf32>
    %12 = tpu.matmul %9, %10, %cst_10 {dimension_numbers = #tpu.dot_dimension_numbers<[1], [0], [0], [1], [0, 0, 1, 1], [], []>} : vector<2x128xbf16>, vector<128x128xbf16>, vector<2x128xf32> -> vector<2x128xf32>
    %13 = vector.broadcast %11 : vector<1x128xf32> to vector<2x128xf32>
    %14 = arith.addf %12, %13 : vector<2x128xf32>
    %cst_11 = arith.constant 0.000000e+00 : f32
    %15 = vector.broadcast %cst_11 : f32 to vector<2x128xf32>
    %16 = arith.maximumf %14, %15 : vector<2x128xf32>
    %17 = arith.truncf %16 : vector<2x128xf32> to vector<2x128xbf16>
    %c0_12 = arith.constant 0 : index
    %c0_13 = arith.constant 0 : index
    %18 = vector.load %arg6[%c0_12, %c0_13] : memref<128x8xbf16, #tpu.memory_space<vmem>>, vector<128x8xbf16>
    %c0_14 = arith.constant 0 : index
    %c0_15 = arith.constant 0 : index
    %19 = vector.load %arg7[%c0_14, %c0_15] : memref<1x8xf32, #tpu.memory_space<vmem>>, vector<1x8xf32>
    %cst_16 = arith.constant dense<0.000000e+00> : vector<2x8xf32>
    %20 = tpu.matmul %17, %18, %cst_16 {dimension_numbers = #tpu.dot_dimension_numbers<[1], [0], [0], [1], [0, 0, 1, 1], [], []>} : vector<2x128xbf16>, vector<128x8xbf16>, vector<2x8xf32> -> vector<2x8xf32>
    %21 = vector.broadcast %19 : vector<1x8xf32> to vector<2x8xf32>
    %22 = arith.addf %20, %21 : vector<2x8xf32>
    %c0_17 = arith.constant 0 : index
    %c0_18 = arith.constant 0 : index
    %23 = vector.load %arg8[%c0_17, %c0_18] : memref<2x8xf32, #tpu.memory_space<vmem>>, vector<2x8xf32>
    tpu.vector_store %arg8[%c0_17, %c0_18], %22 {strides = array<i32>} : memref<2x8xf32, #tpu.memory_space<vmem>>, vector<2x8xf32>,
    return
  }
  func.func @transform_0(%arg0: i32) -> (i32, i32) {
    %c0_i32 = arith.constant 0 : i32
    %c0_i32_0 = arith.constant 0 : i32
    return %arg0, %c0_i32 : i32, i32
  }
  func.func @transform_1(%arg0: i32) -> (i32, i32) {
    %c0_i32 = arith.constant 0 : i32
    %c0_i32_0 = arith.constant 0 : i32
    %c0_i32_1 = arith.constant 0 : i32
    return %c0_i32, %c0_i32_0 : i32, i32
  }
  func.func @transform_2(%arg0: i32) -> (i32, i32) {
    %c0_i32 = arith.constant 0 : i32
    %c0_i32_0 = arith.constant 0 : i32
    %c0_i32_1 = arith.constant 0 : i32
    return %c0_i32, %c0_i32_0 : i32, i32
  }
  func.func @transform_3(%arg0: i32) -> (i32, i32) {
    %c0_i32 = arith.constant 0 : i32
    %c0_i32_0 = arith.constant 0 : i32
    %c0_i32_1 = arith.constant 0 : i32
    return %c0_i32, %c0_i32_0 : i32, i32
  }
  func.func @transform_4(%arg0: i32) -> (i32, i32) {
    %c0_i32 = arith.constant 0 : i32
    %c0_i32_0 = arith.constant 0 : i32
    %c0_i32_1 = arith.constant 0 : i32
    return %c0_i32, %c0_i32_0 : i32, i32
  }
  func.func @transform_5(%arg0: i32) -> (i32, i32) {
    %c0_i32 = arith.constant 0 : i32
    %c0_i32_0 = arith.constant 0 : i32
    %c0_i32_1 = arith.constant 0 : i32
    return %c0_i32, %c0_i32_0 : i32, i32
  }
  func.func @transform_6(%arg0: i32) -> (i32, i32) {
    %c0_i32 = arith.constant 0 : i32
    %c0_i32_0 = arith.constant 0 : i32
    %c0_i32_1 = arith.constant 0 : i32
    return %c0_i32, %c0_i32_0 : i32, i32
  }
  func.func @transform_7(%arg0: i32) -> (i32, i32) {
    %c0_i32 = arith.constant 0 : i32
    %c0_i32_0 = arith.constant 0 : i32
    return %arg0, %c0_i32 : i32, i32
  }
}

module attributes {stable_mosaic.version = 11 : i64} {
  func.func @_fusion_kernel(%arg0: i32, %arg1: memref<2x128xf32, #tpu.memory_space<vmem>>, %arg2: memref<128x128xbf16, #tpu.memory_space<vmem>>, %arg3: memref<1x128xf32, #tpu.memory_space<vmem>>, %arg4: memref<128x128xbf16, #tpu.memory_space<vmem>>, %arg5: memref<1x128xf32, #tpu.memory_space<vmem>>, %arg6: memref<128x8xbf16, #tpu.memory_space<vmem>>, %arg7: memref<1x8xf32, #tpu.memory_space<vmem>>, %arg8: memref<2x8xf32, #tpu.memory_space<vmem>>) attributes {dimension_semantics = [#tpu.dimension_semantics<parallel>], iteration_bounds = array<i64: 1>, scalar_prefetch = 0 : i64, scratch_operands = 0 : i64, tpu.core_type = #tpu.core_type<tc>, window_params = [{transform_indices = @transform_0, window_bounds = array<i64: 2, 128>}, {pipeline_mode = #tpu.pipeline_mode<synchronous>, transform_indices = @transform_1, window_bounds = array<i64: 128, 128>}, {pipeline_mode = #tpu.pipeline_mode<synchronous>, transform_indices = @transform_2, window_bounds = array<i64: 1, 128>}, {pipeline_mode = #tpu.pipeline_mode<synchronous>, transform_indices = @transform_3, window_bounds = array<i64: 128, 128>}, {pipeline_mode = #tpu.pipeline_mode<synchronous>, transform_indices = @transform_4, window_bounds = array<i64: 1, 128>}, {pipeline_mode = #tpu.pipeline_mode<synchronous>, transform_indices = @transform_5, window_bounds = array<i64: 128, 8>}, {pipeline_mode = #tpu.pipeline_mode<synchronous>, transform_indices = @transform_6, window_bounds = array<i64: 1, 8>}, {transform_indices = @transform_7, window_bounds = array<i64: 2, 8>}]} {
    %c0 = arith.constant 0 : index
    %c0_0 = arith.constant 0 : index
    %0 = vector.load %arg1[%c0, %c0_0] : memref<2x128xf32, #tpu.memory_space<vmem>>, vector<2x128xf32>
    %1 = arith.truncf %0 : vector<2x128xf32> to vector<2x128xbf16>
    %c0_1 = arith.constant 0 : index
    %c0_2 = arith.constant 0 : index
    %2 = vector.load %arg2[%c0_1, %c0_2] : memref<128x128xbf16, #tpu.memory_space<vmem>>, vector<128x128xbf16>
    %c0_3 = arith.constant 0 : index
    %c0_4 = arith.constant 0 : index
    %3 = vector.load %arg3[%c0_3, %c0_4] : memref<1x128xf32, #tpu.memory_space<vmem>>, vector<1x128xf32>
    %cst = arith.constant dense<0.000000e+00> : vector<2x128xf32>
    %4 = tpu.matmul %1, %2, %cst {dimension_numbers = #tpu.dot_dimension_numbers<[1], [0], [0], [1], [0, 0, 1, 1], [], []>} : vector<2x128xbf16>, vector<128x128xbf16>, vector<2x128xf32> -> vector<2x128xf32>
    %5 = vector.broadcast %3 : vector<1x128xf32> to vector<2x128xf32>
    %6 = arith.addf %4, %5 : vector<2x128xf32>
    %cst_5 = arith.constant 0.000000e+00 : f32
    %7 = vector.broadcast %cst_5 : f32 to vector<2x128xf32>
    %8 = arith.maximumf %6, %7 : vector<2x128xf32>
    %9 = arith.truncf %8 : vector<2x128xf32> to vector<2x128xbf16>
    %c0_6 = arith.constant 0 : index
    %c0_7 = arith.constant 0 : index
    %10 = vector.load %arg4[%c0_6, %c0_7] : memref<128x128xbf16, #tpu.memory_space<vmem>>, vector<128x128xbf16>
    %c0_8 = arith.constant 0 : index
    %c0_9 = arith.constant 0 : index
    %11 = vector.load %arg5[%c0_8, %c0_9] : memref<1x128xf32, #tpu.memory_space<vmem>>, vector<1x128xf32>
    %cst_10 = arith.constant dense<0.000000e+00> : vector<2x128xf32>
    %12 = tpu.matmul %9, %10, %cst_10 {dimension_numbers = #tpu.dot_dimension_numbers<[1], [0], [0], [1], [0, 0, 1, 1], [], []>} : vector<2x128xbf16>, vector<128x128xbf16>, vector<2x128xf32> -> vector<2x128xf32>
    %13 = vector.broadcast %11 : vector<1x128xf32> to vector<2x128xf32>
    %14 = arith.addf %12, %13 : vector<2x128xf32>
    %cst_11 = arith.constant 0.000000e+00 : f32
    %15 = vector.broadcast %cst_11 : f32 to vector<2x128xf32>
    %16 = arith.maximumf %14, %15 : vector<2x128xf32>
    %17 = arith.truncf %16 : vector<2x128xf32> to vector<2x128xbf16>
    %c0_12 = arith.constant 0 : index
    %c0_13 = arith.constant 0 : index
    %18 = vector.load %arg6[%c0_12, %c0_13] : memref<128x8xbf16, #tpu.memory_space<vmem>>, vector<128x8xbf16>
    %c0_14 = arith.constant 0 : index
    %c0_15 = arith.constant 0 : index
    %19 = vector.load %arg7[%c0_14, %c0_15] : memref<1x8xf32, #tpu.memory_space<vmem>>, vector<1x8xf32>
    %cst_16 = arith.constant dense<0.000000e+00> : vector<2x8xf32>
    %20 = tpu.matmul %17, %18, %cst_16 {dimension_numbers = #tpu.dot_dimension_numbers<[1], [0], [0], [1], [0, 0, 1, 1], [], []>} : vector<2x128xbf16>, vector<128x8xbf16>, vector<2x8xf32> -> vector<2x8xf32>
    %21 = vector.broadcast %19 : vector<1x8xf32> to vector<2x8xf32>
    %22 = arith.addf %20, %21 : vector<2x8xf32>
    %c0_17 = arith.constant 0 : index
    %c0_18 = arith.constant 0 : index
    %23 = vector.load %arg8[%c0_17, %c0_18] : memref<2x8xf32, #tpu.memory_space<vmem>>, vector<2x8xf32>
    tpu.vector_store %arg8[%c0_17, %c0_18], %22 {strides = array<i32>} : memref<2x8xf32, #tpu.memory_space<vmem>>, vector<2x8xf32>,
    return
  }
  func.func @transform_0(%arg0: i32) -> (i32, i32) {
    %c0_i32 = arith.constant 0 : i32
    %c0_i32_0 = arith.constant 0 : i32
    return %arg0, %c0_i32 : i32, i32
  }
  func.func @transform_1(%arg0: i32) -> (i32, i32) {
    %c0_i32 = arith.constant 0 : i32
    %c0_i32_0 = arith.constant 0 : i32
    %c0_i32_1 = arith.constant 0 : i32
    return %c0_i32, %c0_i32_0 : i32, i32
  }
  func.func @transform_2(%arg0: i32) -> (i32, i32) {
    %c0_i32 = arith.constant 0 : i32
    %c0_i32_0 = arith.constant 0 : i32
    %c0_i32_1 = arith.constant 0 : i32
    return %c0_i32, %c0_i32_0 : i32, i32
  }
  func.func @transform_3(%arg0: i32) -> (i32, i32) {
    %c0_i32 = arith.constant 0 : i32
    %c0_i32_0 = arith.constant 0 : i32
    %c0_i32_1 = arith.constant 0 : i32
    return %c0_i32, %c0_i32_0 : i32, i32
  }
  func.func @transform_4(%arg0: i32) -> (i32, i32) {
    %c0_i32 = arith.constant 0 : i32
    %c0_i32_0 = arith.constant 0 : i32
    %c0_i32_1 = arith.constant 0 : i32
    return %c0_i32, %c0_i32_0 : i32, i32
  }
  func.func @transform_5(%arg0: i32) -> (i32, i32) {
    %c0_i32 = arith.constant 0 : i32
    %c0_i32_0 = arith.constant 0 : i32
    %c0_i32_1 = arith.constant 0 : i32
    return %c0_i32, %c0_i32_0 : i32, i32
  }
  func.func @transform_6(%arg0: i32) -> (i32, i32) {
    %c0_i32 = arith.constant 0 : i32
    %c0_i32_0 = arith.constant 0 : i32
    %c0_i32_1 = arith.constant 0 : i32
    return %c0_i32, %c0_i32_0 : i32, i32
  }
  func.func @transform_7(%arg0: i32) -> (i32, i32) {
    %c0_i32 = arith.constant 0 : i32
    %c0_i32_0 = arith.constant 0 : i32
    return %arg0, %c0_i32 : i32, i32
  }
}

</mosaic_0001>

<llo_original>
// kernel: tpu_custom_call.1
$region0: #{tpu_custom_call.1}
  #allocation0 [shape = 'u32[]', space=smem, size = 0x4, offset = 0x4, fixed_abs, tag = 'smem constant byte address 0x4 - core index']
  #allocation1 [shape = 'u32[144,128]{1,0:T(1,128)}', space=vmem, size = 0x12000, scoped, tag = 'internal scratch']
  %s0 = inlined_call_operand.vmem [shape: f32[2,128], index: 0, kind: input, shape index: {}]
  %s1 = inlined_call_operand.vmem [shape: bf16[128,128], index: 1, kind: input, shape index: {}]
  %s2 = inlined_call_operand.vmem [shape: f32[1,128], index: 2, kind: input, shape index: {}]
  %s3 = inlined_call_operand.hbm [shape: bf16[128,128], index: 3, kind: input, shape index: {}]
  %s4 = inlined_call_operand.vmem [shape: f32[1,128], index: 4, kind: input, shape index: {}]
  %s5 = inlined_call_operand.vmem [shape: bf16[128,8], index: 5, kind: input, shape index: {}]
  %s6 = inlined_call_operand.vmem [shape: f32[1,8], index: 6, kind: input, shape index: {}]
  %s7 = inlined_call_operand.hbm [shape: f32[2,8], index: 7, kind: output, shape index: {}]
  %s8 = sld [smem:[#allocation0]]
  $region42: #{tpu_custom_call.1} parent=0
    _
  %s10 = ssub.s32 1, %s8
  %s11 = scalar_select 0, %s10, %s8
  $region1: #{tpu_custom_call.1} parent=0
    #allocation2 [shape = 'u8[32768]{0}', space=vmem, size = 0x8000, scoped, tag = 'input window, operand 3, single buffered']
    #allocation3 [shape = 's32[1]{0}', space=sflag, size = 0x4, scoped, tag = 'scoped memory for tpu_custom_call.1']
    #allocation4 [shape = 's32[1]{0}', space=sflag, size = 0x4, scoped, tag = 'scoped memory for tpu_custom_call.1']
    #allocation5 [shape = 'u8[1024]{0}', space=vmem, size = 0x400, scoped, tag = 'output window, operand 0, single buffered']
    %12 = vsyncpa [#allocation3], 0
    %13 = vsyncpa [#allocation4], 0
    // Predicated region
    $region2: #{tpu_custom_call.1} parent=1 // pred_check
      _
    $region3: #{tpu_custom_call.1} parent=1 // pred_check_branch
      %15 = sbr.rel (0) target = $region5
    $region4: #{tpu_custom_call.1} parent=1 // pred_region
      _
    $region5: #{tpu_custom_call.1} parent=1 // pred_fallthru
      _
    // Predicated region
    $region6: #{tpu_custom_call.1} parent=1 // pred_check
      _
    $region7: #{tpu_custom_call.1} parent=1 // pred_check_branch
      %17 = sbr.rel (0) target = $region9
    $region8: #{tpu_custom_call.1} parent=1 // pred_region
      _
    $region9: #{tpu_custom_call.1} parent=1 // pred_fallthru
      _
    // Predicated region
    $region10: #{tpu_custom_call.1} parent=1 // pred_check
      _
    $region11: #{tpu_custom_call.1} parent=1 // pred_check_branch
      %19 = sbr.rel (0) target = $region13
    $region12: #{tpu_custom_call.1} parent=1 // pred_region
      _
    $region13: #{tpu_custom_call.1} parent=1 // pred_fallthru
      _
    // Predicated region
    $region14: #{tpu_custom_call.1} parent=1 // pred_check
      _
    $region15: #{tpu_custom_call.1} parent=1 // pred_check_branch
      %21 = sbr.rel (0) target = $region17
    $region16: #{tpu_custom_call.1} parent=1 // pred_region
      %s23 = ssub.s32 1024, 1024
      %24 = vsyncadd [#allocation3], %s23
      %s25 = sshll.u32 [#allocation2], 4
      %s26 = int_to_ptr.vmem [resolvable:$true] %s25
      %31 = dma.hbm_to_vmem [thread:$0]  %s3, 1024, %s26, [#allocation3], 64, 64, 4
    $region17: #{tpu_custom_call.1} parent=1 // pred_fallthru
      _
    // Predicated region
    $region18: #{tpu_custom_call.1} parent=1 // pred_check
      _
    $region19: #{tpu_custom_call.1} parent=1 // pred_check_branch
      %33 = sbr.rel (0) target = $region21
    $region20: #{tpu_custom_call.1} parent=1 // pred_region
      _
    $region21: #{tpu_custom_call.1} parent=1 // pred_fallthru
      _
    // Predicated region
    $region22: #{tpu_custom_call.1} parent=1 // pred_check
      _
    $region23: #{tpu_custom_call.1} parent=1 // pred_check_branch
      %35 = sbr.rel (0) target = $region25
    $region24: #{tpu_custom_call.1} parent=1 // pred_region
      _
    $region25: #{tpu_custom_call.1} parent=1 // pred_fallthru
      _
    // Predicated region
    $region26: #{tpu_custom_call.1} parent=1 // pred_check
      _
    $region27: #{tpu_custom_call.1} parent=1 // pred_check_branch
      %37 = sbr.rel (0) target = $region29
    $region28: #{tpu_custom_call.1} parent=1 // pred_region
      _
    $region29: #{tpu_custom_call.1} parent=1 // pred_fallthru
      _
    // Predicated region
    $region30: #{tpu_custom_call.1} parent=1 // pred_check
      _
    $region31: #{tpu_custom_call.1} parent=1 // pred_check_branch
      %39 = sbr.rel (0) target = $region33
    $region32: #{tpu_custom_call.1} parent=1 // pred_region
      %40 = dma.done [#allocation3], 1024
    $region33: #{tpu_custom_call.1} parent=1 // pred_fallthru
      _
    %v42 = vld [vmem:[%s0] sm:$0x3]
    %v43 = vpack.c.bf16 %v42, %v42
    %v44 = vld [vmem:[%s1] sm:$0xf]
    %v45 = vld [vmem:[%s1 + $0x4] sm:$0xf]
    %v46 = vld [vmem:[%s1 + $0x8] sm:$0xf]
    %v47 = vld [vmem:[%s1 + $0xc] sm:$0xf]
    %v48 = vld [vmem:[%s1 + $0x10] sm:$0xf]
    %v49 = vld [vmem:[%s1 + $0x14] sm:$0xf]
    %v50 = vld [vmem:[%s1 + $0x18] sm:$0xf]
    %v51 = vld [vmem:[%s1 + $0x1c] sm:$0xf]
    %v52 = vld [vmem:[%s1 + $0x20] sm:$0xf]
    %v53 = vld [vmem:[%s1 + $0x24] sm:$0xf]
    %v54 = vld [vmem:[%s1 + $0x28] sm:$0xf]
    %v55 = vld [vmem:[%s1 + $0x2c] sm:$0xf]
    %v56 = vld [vmem:[%s1 + $0x30] sm:$0xf]
    %v57 = vld [vmem:[%s1 + $0x34] sm:$0xf]
    %v58 = vld [vmem:[%s1 + $0x38] sm:$0xf]
    %v59 = vld [vmem:[%s1 + $0x3c] sm:$0xf]
    %v60 = vld [vmem:[%s2] sm:$0x1]
    %v62 = vlaneseq
    %v63 = vshrl.u32 %v62, 7
    %v64 = vsub.s32 0, %v63
    %v65 = vrot.slane %v60, %v64
    %v83 = vunpack.c.l.b16 %v44
    %v84 = vunpack.c.l.b16 %v45
    %v85 = vunpack.c.l.b16 %v46
    %v86 = vunpack.c.l.b16 %v47
    %v87 = vunpack.c.l.b16 %v48
    %v88 = vunpack.c.l.b16 %v49
    %v89 = vunpack.c.l.b16 %v50
    %v90 = vunpack.c.l.b16 %v51
    %v91 = vunpack.c.l.b16 %v52
    %v92 = vunpack.c.l.b16 %v53
    %v93 = vunpack.c.l.b16 %v54
    %v94 = vunpack.c.l.b16 %v55
    %v95 = vunpack.c.l.b16 %v56
    %v96 = vunpack.c.l.b16 %v57
    %v97 = vunpack.c.l.b16 %v58
    %v98 = vunpack.c.l.b16 %v59
    %v99 = vpack.c.b16 %v84, %v83
    %v100 = vpack.c.b16 %v86, %v85
    %v101 = vpack.c.b16 %v88, %v87
    %v102 = vpack.c.b16 %v90, %v89
    %v103 = vpack.c.b16 %v92, %v91
    %v104 = vpack.c.b16 %v94, %v93
    %v105 = vpack.c.b16 %v96, %v95
    %v106 = vpack.c.b16 %v98, %v97
    %115 = vmatprep.subr.bf16.mxu0 0
    %116 = vmatpush1.bf16.msra.mxu0 %v99
    %117 = vmatprep.subr.bf16.mxu0 0
    %118 = vmatpush1.bf16.msra.mxu0 %v100
    %119 = vmatprep.subr.bf16.mxu0 0
    %120 = vmatpush1.bf16.msra.mxu0 %v101
    %121 = vmatprep.subr.bf16.mxu0 0
    %122 = vmatpush1.bf16.msra.mxu0 %v102
    %123 = vmatprep.subr.bf16.mxu0 0
    %124 = vmatpush1.bf16.msra.mxu0 %v103
    %125 = vmatprep.subr.bf16.mxu0 0
    %126 = vmatpush1.bf16.msra.mxu0 %v104
    %127 = vmatprep.subr.bf16.mxu0 0
    %128 = vmatpush1.bf16.msra.mxu0 %v105
    %129 = vmatprep.subr.bf16.mxu0 0
    %130 = vmatpush1.bf16.msra.mxu0 %v106
    %131 = vmatprep.subr.bf16.mxu0 0
    %132 = vmatpush1.bf16.msra.mxu0 0
    %133 = vmatprep.subr.bf16.mxu0 0
    %134 = vmatpush1.bf16.msra.mxu0 0
    %135 = vmatprep.subr.bf16.mxu0 0
    %136 = vmatpush1.bf16.msra.mxu0 0
    %137 = vmatprep.subr.bf16.mxu0 0
    %138 = vmatpush1.bf16.msra.mxu0 0
    %139 = vmatprep.subr.bf16.mxu0 0
    %140 = vmatpush1.bf16.msra.mxu0 0
    %141 = vmatprep.subr.bf16.mxu0 0
    %142 = vmatpush1.bf16.msra.mxu0 0
    %143 = vmatprep.subr.bf16.mxu0 0
    %144 = vmatpush1.bf16.msra.mxu0 0
    %145 = vmatprep.subr.bf16.mxu0 0
    %146 = vmatpush1.bf16.msra.mxu0 0
    %147 = vmatprep.mubr.bf16.mxu0 0
    %148 = vmatmul.mubr.bf16.gmra.mrb[0].mxu0 %v43
    %v149 = vpop.f32.mrb[0].mxu0
    %v150 = vadd.f32 %v65, %v149
    %v151 = vpop.f32.mrb[0].mxu0
    %v152 = vpop.f32.mrb[0].mxu0
    %v153 = vpop.f32.mrb[0].mxu0
    %154 = vdwg.mxu0
    %v155 = vmax.f32 %v150, 0.0
    %v156 = vpack.c.bf16 %v155, %v155
    %v157 = vld [vmem:[#allocation2] sm:$0xf]
    %v158 = vld [vmem:[#allocation2 + $0x4] sm:$0xf]
    %v159 = vld [vmem:[#allocation2 + $0x8] sm:$0xf]
    %v160 = vld [vmem:[#allocation2 + $0xc] sm:$0xf]
    %v161 = vld [vmem:[#allocation2 + $0x10] sm:$0xf]
    %v162 = vld [vmem:[#allocation2 + $0x14] sm:$0xf]
    %v163 = vld [vmem:[#allocation2 + $0x18] sm:$0xf]
    %v164 = vld [vmem:[#allocation2 + $0x1c] sm:$0xf]
    %v165 = vld [vmem:[#allocation2 + $0x20] sm:$0xf]
    %v166 = vld [vmem:[#allocation2 + $0x24] sm:$0xf]
    %v167 = vld [vmem:[#allocation2 + $0x28] sm:$0xf]
    %v168 = vld [vmem:[#allocation2 + $0x2c] sm:$0xf]
    %v169 = vld [vmem:[#allocation2 + $0x30] sm:$0xf]
    %v170 = vld [vmem:[#allocation2 + $0x34] sm:$0xf]
    %v171 = vld [vmem:[#allocation2 + $0x38] sm:$0xf]
    %v172 = vld [vmem:[#allocation2 + $0x3c] sm:$0xf]
    %v173 = vld [vmem:[%s4] sm:$0x1]
    %v175 = vlaneseq
    %v176 = vshrl.u32 %v175, 7
    %v177 = vsub.s32 0, %v176
    %v178 = vrot.slane %v173, %v177
    %v196 = vunpack.c.l.b16 %v157
    %v197 = vunpack.c.l.b16 %v158
    %v198 = vunpack.c.l.b16 %v159
    %v199 = vunpack.c.l.b16 %v160
    %v200 = vunpack.c.l.b16 %v161
    %v201 = vunpack.c.l.b16 %v162
    %v202 = vunpack.c.l.b16 %v163
    %v203 = vunpack.c.l.b16 %v164
    %v204 = vunpack.c.l.b16 %v165
    %v205 = vunpack.c.l.b16 %v166
    %v206 = vunpack.c.l.b16 %v167
    %v207 = vunpack.c.l.b16 %v168
    %v208 = vunpack.c.l.b16 %v169
    %v209 = vunpack.c.l.b16 %v170
    %v210 = vunpack.c.l.b16 %v171
    %v211 = vunpack.c.l.b16 %v172
    %v212 = vpack.c.b16 %v197, %v196
    %v213 = vpack.c.b16 %v199, %v198
    %v214 = vpack.c.b16 %v201, %v200
    %v215 = vpack.c.b16 %v203, %v202
    %v216 = vpack.c.b16 %v205, %v204
    %v217 = vpack.c.b16 %v207, %v206
    %v218 = vpack.c.b16 %v209, %v208
    %v219 = vpack.c.b16 %v211, %v210
    %228 = vmatprep.subr.bf16.mxu0 0
    %229 = vmatpush1.bf16.msra.mxu0 %v212
    %230 = vmatprep.subr.bf16.mxu0 0
    %231 = vmatpush1.bf16.msra.mxu0 %v213
    %232 = vmatprep.subr.bf16.mxu0 0
    %233 = vmatpush1.bf16.msra.mxu0 %v214
    %234 = vmatprep.subr.bf16.mxu0 0
    %235 = vmatpush1.bf16.msra.mxu0 %v215
    %236 = vmatprep.subr.bf16.mxu0 0
    %237 = vmatpush1.bf16.msra.mxu0 %v216
    %238 = vmatprep.subr.bf16.mxu0 0
    %239 = vmatpush1.bf16.msra.mxu0 %v217
    %240 = vmatprep.subr.bf16.mxu0 0
    %241 = vmatpush1.bf16.msra.mxu0 %v218
    %242 = vmatprep.subr.bf16.mxu0 0
    %243 = vmatpush1.bf16.msra.mxu0 %v219
    %244 = vmatprep.subr.bf16.mxu0 0
    %245 = vmatpush1.bf16.msra.mxu0 0
    %246 = vmatprep.subr.bf16.mxu0 0
    %247 = vmatpush1.bf16.msra.mxu0 0
    %248 = vmatprep.subr.bf16.mxu0 0
    %249 = vmatpush1.bf16.msra.mxu0 0
    %250 = vmatprep.subr.bf16.mxu0 0
    %251 = vmatpush1.bf16.msra.mxu0 0
    %252 = vmatprep.subr.bf16.mxu0 0
    %253 = vmatpush1.bf16.msra.mxu0 0
    %254 = vmatprep.subr.bf16.mxu0 0
    %255 = vmatpush1.bf16.msra.mxu0 0
    %256 = vmatprep.subr.bf16.mxu0 0
    %257 = vmatpush1.bf16.msra.mxu0 0
    %258 = vmatprep.subr.bf16.mxu0 0
    %259 = vmatpush1.bf16.msra.mxu0 0
    %260 = vmatprep.mubr.bf16.mxu0 0
    %261 = vmatmul.mubr.bf16.gmra.mrb[0].mxu0 %v156
    %v262 = vpop.f32.mrb[0].mxu0
    %v263 = vadd.f32 %v178, %v262
    %v264 = vpop.f32.mrb[0].mxu0
    %v265 = vpop.f32.mrb[0].mxu0
    %v266 = vpop.f32.mrb[0].mxu0
    %267 = vdwg.mxu0
    %v268 = vmax.f32 %v263, 0.0
    %v269 = vpack.c.bf16 %v268, %v268
    %v270 = vld [vmem:[%s5] sm:$0xf]
    %v271 = vld [vmem:[%s5 + $0x4] sm:$0xf]
    %v272 = vld [vmem:[%s5 + $0x8] sm:$0xf]
    %v273 = vld [vmem:[%s5 + $0xc] sm:$0xf]
    %v274 = vld [vmem:[%s5 + $0x10] sm:$0xf]
    %v275 = vld [vmem:[%s5 + $0x14] sm:$0xf]
    %v276 = vld [vmem:[%s5 + $0x18] sm:$0xf]
    %v277 = vld [vmem:[%s5 + $0x1c] sm:$0xf]
    %v278 = vld [vmem:[%s5 + $0x20] sm:$0xf]
    %v279 = vld [vmem:[%s5 + $0x24] sm:$0xf]
    %v280 = vld [vmem:[%s5 + $0x28] sm:$0xf]
    %v281 = vld [vmem:[%s5 + $0x2c] sm:$0xf]
    %v282 = vld [vmem:[%s5 + $0x30] sm:$0xf]
    %v283 = vld [vmem:[%s5 + $0x34] sm:$0xf]
    %v284 = vld [vmem:[%s5 + $0x38] sm:$0xf]
    %v285 = vld [vmem:[%s5 + $0x3c] sm:$0xf]
    %v286 = vld [vmem:[%s6] sm:$0x1]
    %v288 = vlaneseq
    %v289 = vshrl.u32 %v288, 7
    %v290 = vsub.s32 0, %v289
    %v291 = vrot.slane %v286, %v290
    %v309 = vunpack.c.l.b16 %v270
    %v310 = vunpack.c.l.b16 %v271
    %v311 = vunpack.c.l.b16 %v272
    %v312 = vunpack.c.l.b16 %v273
    %v313 = vunpack.c.l.b16 %v274
    %v314 = vunpack.c.l.b16 %v275
    %v315 = vunpack.c.l.b16 %v276
    %v316 = vunpack.c.l.b16 %v277
    %v317 = vunpack.c.l.b16 %v278
    %v318 = vunpack.c.l.b16 %v279
    %v319 = vunpack.c.l.b16 %v280
    %v320 = vunpack.c.l.b16 %v281
    %v321 = vunpack.c.l.b16 %v282
    %v322 = vunpack.c.l.b16 %v283
    %v323 = vunpack.c.l.b16 %v284
    %v324 = vunpack.c.l.b16 %v285
    %v325 = vpack.c.b16 %v310, %v309
    %v326 = vpack.c.b16 %v312, %v311
    %v327 = vpack.c.b16 %v314, %v313
    %v328 = vpack.c.b16 %v316, %v315
    %v329 = vpack.c.b16 %v318, %v317
    %v330 = vpack.c.b16 %v320, %v319
    %v331 = vpack.c.b16 %v322, %v321
    %v332 = vpack.c.b16 %v324, %v323
    %341 = vmatprep.subr.bf16.mxu0 0
    %342 = vmatpush1.bf16.msra.mxu0 %v325
    %343 = vmatprep.subr.bf16.mxu0 0
    %344 = vmatpush1.bf16.msra.mxu0 %v326
    %345 = vmatprep.subr.bf16.mxu0 0
    %346 = vmatpush1.bf16.msra.mxu0 %v327
    %347 = vmatprep.subr.bf16.mxu0 0
    %348 = vmatpush1.bf16.msra.mxu0 %v328
    %349 = vmatprep.subr.bf16.mxu0 0
    %350 = vmatpush1.bf16.msra.mxu0 %v329
    %351 = vmatprep.subr.bf16.mxu0 0
    %352 = vmatpush1.bf16.msra.mxu0 %v330
    %353 = vmatprep.subr.bf16.mxu0 0
    %354 = vmatpush1.bf16.msra.mxu0 %v331
    %355 = vmatprep.subr.bf16.mxu0 0
    %356 = vmatpush1.bf16.msra.mxu0 %v332
    %357 = vmatprep.subr.bf16.mxu0 0
    %358 = vmatpush1.bf16.msra.mxu0 0
    %359 = vmatprep.subr.bf16.mxu0 0
    %360 = vmatpush1.bf16.msra.mxu0 0
    %361 = vmatprep.subr.bf16.mxu0 0
    %362 = vmatpush1.bf16.msra.mxu0 0
    %363 = vmatprep.subr.bf16.mxu0 0
    %364 = vmatpush1.bf16.msra.mxu0 0
    %365 = vmatprep.subr.bf16.mxu0 0
    %366 = vmatpush1.bf16.msra.mxu0 0
    %367 = vmatprep.subr.bf16.mxu0 0
    %368 = vmatpush1.bf16.msra.mxu0 0
    %369 = vmatprep.subr.bf16.mxu0 0
    %370 = vmatpush1.bf16.msra.mxu0 0
    %371 = vmatprep.subr.bf16.mxu0 0
    %372 = vmatpush1.bf16.msra.mxu0 0
    %373 = vmatprep.mubr.bf16.mxu0 0
    %374 = vmatmul.mubr.bf16.gmra.mrb[0].mxu0 %v269
    %v375 = vpop.f32.mrb[0].mxu0
    %v376 = vadd.f32 %v291, %v375
    %v377 = vpop.f32.mrb[0].mxu0
    %v378 = vpop.f32.mrb[0].mxu0
    %v379 = vpop.f32.mrb[0].mxu0
    %380 = vdwg.mxu0
    %vm381 = vcmask 58368
    %382 = vst.msk [vmem:[#allocation5] sm:$0x3] %vm381, %v376
    // Predicated region
    $region34: #{tpu_custom_call.1} parent=1 // pred_check
      _
    $region35: #{tpu_custom_call.1} parent=1 // pred_check_branch
      %384 = sbr.rel (0) target = $region37
    $region36: #{tpu_custom_call.1} parent=1 // pred_region
      %s386 = ssub.s32 32, 32
      %387 = vsyncadd [#allocation4], %s386
      %s389 = sshll.u32 [#allocation5], 4
      %s390 = int_to_ptr.vmem [resolvable:$true] %s389
      %392 = dma.vmem_to_hbm [thread:$0]  %s390, 32, %s7, [#allocation4]
    $region37: #{tpu_custom_call.1} parent=1 // pred_fallthru
      _
    // Predicated region
    $region38: #{tpu_custom_call.1} parent=1 // pred_check
      _
    $region39: #{tpu_custom_call.1} parent=1 // pred_check_branch
      %394 = sbr.rel (0) target = $region41
    $region40: #{tpu_custom_call.1} parent=1 // pred_region
      %395 = dma.done [#allocation4], 32
    $region41: #{tpu_custom_call.1} parent=1 // pred_fallthru
      _
    %396 = vsyncpa [#allocation3], 1
    %397 = vsyncpa [#allocation4], 1

// kernel: tpu_custom_call.1
$region0: #{tpu_custom_call.1}
  #allocation0 [shape = 'u32[]', space=smem, size = 0x4, offset = 0x4, fixed_abs, tag = 'smem constant byte address 0x4 - core index']
  #allocation1 [shape = 'u32[144,128]{1,0:T(1,128)}', space=vmem, size = 0x12000, scoped, tag = 'internal scratch']
  %s0 = inlined_call_operand.vmem [shape: f32[2,128], index: 0, kind: input, shape index: {}]
  %s1 = inlined_call_operand.vmem [shape: bf16[128,128], index: 1, kind: input, shape index: {}]
  %s2 = inlined_call_operand.vmem [shape: f32[1,128], index: 2, kind: input, shape index: {}]
  %s3 = inlined_call_operand.hbm [shape: bf16[128,128], index: 3, kind: input, shape index: {}]
  %s4 = inlined_call_operand.vmem [shape: f32[1,128], index: 4, kind: input, shape index: {}]
  %s5 = inlined_call_operand.vmem [shape: bf16[128,8], index: 5, kind: input, shape index: {}]
  %s6 = inlined_call_operand.vmem [shape: f32[1,8], index: 6, kind: input, shape index: {}]
  %s7 = inlined_call_operand.hbm [shape: f32[2,8], index: 7, kind: output, shape index: {}]
  %s8 = sld [smem:[#allocation0]]
  $region42: #{tpu_custom_call.1} parent=0
    _
  %s10 = ssub.s32 1, %s8
  %s11 = scalar_select 0, %s10, %s8
  $region1: #{tpu_custom_call.1} parent=0
    #allocation2 [shape = 'u8[32768]{0}', space=vmem, size = 0x8000, scoped, tag = 'input window, operand 3, single buffered']
    #allocation3 [shape = 's32[1]{0}', space=sflag, size = 0x4, scoped, tag = 'scoped memory for tpu_custom_call.1']
    #allocation4 [shape = 's32[1]{0}', space=sflag, size = 0x4, scoped, tag = 'scoped memory for tpu_custom_call.1']
    #allocation5 [shape = 'u8[1024]{0}', space=vmem, size = 0x400, scoped, tag = 'output window, operand 0, single buffered']
    %12 = vsyncpa [#allocation3], 0
    %13 = vsyncpa [#allocation4], 0
    // Predicated region
    $region2: #{tpu_custom_call.1} parent=1 // pred_check
      _
    $region3: #{tpu_custom_call.1} parent=1 // pred_check_branch
      %15 = sbr.rel (0) target = $region5
    $region4: #{tpu_custom_call.1} parent=1 // pred_region
      _
    $region5: #{tpu_custom_call.1} parent=1 // pred_fallthru
      _
    // Predicated region
    $region6: #{tpu_custom_call.1} parent=1 // pred_check
      _
    $region7: #{tpu_custom_call.1} parent=1 // pred_check_branch
      %17 = sbr.rel (0) target = $region9
    $region8: #{tpu_custom_call.1} parent=1 // pred_region
      _
    $region9: #{tpu_custom_call.1} parent=1 // pred_fallthru
      _
    // Predicated region
    $region10: #{tpu_custom_call.1} parent=1 // pred_check
      _
    $region11: #{tpu_custom_call.1} parent=1 // pred_check_branch
      %19 = sbr.rel (0) target = $region13
    $region12: #{tpu_custom_call.1} parent=1 // pred_region
      _
    $region13: #{tpu_custom_call.1} parent=1 // pred_fallthru
      _
    // Predicated region
    $region14: #{tpu_custom_call.1} parent=1 // pred_check
      _
    $region15: #{tpu_custom_call.1} parent=1 // pred_check_branch
      %21 = sbr.rel (0) target = $region17
    $region16: #{tpu_custom_call.1} parent=1 // pred_region
      %s23 = ssub.s32 1024, 1024
      %24 = vsyncadd [#allocation3], %s23
      %s25 = sshll.u32 [#allocation2], 4
      %s26 = int_to_ptr.vmem [resolvable:$true] %s25
      %31 = dma.hbm_to_vmem [thread:$0]  %s3, 1024, %s26, [#allocation3], 64, 64, 4
    $region17: #{tpu_custom_call.1} parent=1 // pred_fallthru
      _
    // Predicated region
    $region18: #{tpu_custom_call.1} parent=1 // pred_check
      _
    $region19: #{tpu_custom_call.1} parent=1 // pred_check_branch
      %33 = sbr.rel (0) target = $region21
    $region20: #{tpu_custom_call.1} parent=1 // pred_region
      _
    $region21: #{tpu_custom_call.1} parent=1 // pred_fallthru
      _
    // Predicated region
    $region22: #{tpu_custom_call.1} parent=1 // pred_check
      _
    $region23: #{tpu_custom_call.1} parent=1 // pred_check_branch
      %35 = sbr.rel (0) target = $region25
    $region24: #{tpu_custom_call.1} parent=1 // pred_region
      _
    $region25: #{tpu_custom_call.1} parent=1 // pred_fallthru
      _
    // Predicated region
    $region26: #{tpu_custom_call.1} parent=1 // pred_check
      _
    $region27: #{tpu_custom_call.1} parent=1 // pred_check_branch
      %37 = sbr.rel (0) target = $region29
    $region28: #{tpu_custom_call.1} parent=1 // pred_region
      _
    $region29: #{tpu_custom_call.1} parent=1 // pred_fallthru
      _
    // Predicated region
    $region30: #{tpu_custom_call.1} parent=1 // pred_check
      _
    $region31: #{tpu_custom_call.1} parent=1 // pred_check_branch
      %39 = sbr.rel (0) target = $region33
    $region32: #{tpu_custom_call.1} parent=1 // pred_region
      %40 = dma.done [#allocation3], 1024
    $region33: #{tpu_custom_call.1} parent=1 // pred_fallthru
      _
    %v42 = vld [vmem:[%s0] sm:$0x3]
    %v43 = vpack.c.bf16 %v42, %v42
    %v44 = vld [vmem:[%s1] sm:$0xf]
    %v45 = vld [vmem:[%s1 + $0x4] sm:$0xf]
    %v46 = vld [vmem:[%s1 + $0x8] sm:$0xf]
    %v47 = vld [vmem:[%s1 + $0xc] sm:$0xf]
    %v48 = vld [vmem:[%s1 + $0x10] sm:$0xf]
    %v49 = vld [vmem:[%s1 + $0x14] sm:$0xf]
    %v50 = vld [vmem:[%s1 + $0x18] sm:$0xf]
    %v51 = vld [vmem:[%s1 + $0x1c] sm:$0xf]
    %v52 = vld [vmem:[%s1 + $0x20] sm:$0xf]
    %v53 = vld [vmem:[%s1 + $0x24] sm:$0xf]
    %v54 = vld [vmem:[%s1 + $0x28] sm:$0xf]
    %v55 = vld [vmem:[%s1 + $0x2c] sm:$0xf]
    %v56 = vld [vmem:[%s1 + $0x30] sm:$0xf]
    %v57 = vld [vmem:[%s1 + $0x34] sm:$0xf]
    %v58 = vld [vmem:[%s1 + $0x38] sm:$0xf]
    %v59 = vld [vmem:[%s1 + $0x3c] sm:$0xf]
    %v60 = vld [vmem:[%s2] sm:$0x1]
    %v62 = vlaneseq
    %v63 = vshrl.u32 %v62, 7
    %v64 = vsub.s32 0, %v63
    %v65 = vrot.slane %v60, %v64
    %v83 = vunpack.c.l.b16 %v44
    %v84 = vunpack.c.l.b16 %v45
    %v85 = vunpack.c.l.b16 %v46
    %v86 = vunpack.c.l.b16 %v47
    %v87 = vunpack.c.l.b16 %v48
    %v88 = vunpack.c.l.b16 %v49
    %v89 = vunpack.c.l.b16 %v50
    %v90 = vunpack.c.l.b16 %v51
    %v91 = vunpack.c.l.b16 %v52
    %v92 = vunpack.c.l.b16 %v53
    %v93 = vunpack.c.l.b16 %v54
    %v94 = vunpack.c.l.b16 %v55
    %v95 = vunpack.c.l.b16 %v56
    %v96 = vunpack.c.l.b16 %v57
    %v97 = vunpack.c.l.b16 %v58
    %v98 = vunpack.c.l.b16 %v59
    %v99 = vpack.c.b16 %v84, %v83
    %v100 = vpack.c.b16 %v86, %v85
    %v101 = vpack.c.b16 %v88, %v87
    %v102 = vpack.c.b16 %v90, %v89
    %v103 = vpack.c.b16 %v92, %v91
    %v104 = vpack.c.b16 %v94, %v93
    %v105 = vpack.c.b16 %v96, %v95
    %v106 = vpack.c.b16 %v98, %v97
    %115 = vmatprep.subr.bf16.mxu0 0
    %116 = vmatpush1.bf16.msra.mxu0 %v99
    %117 = vmatprep.subr.bf16.mxu0 0
    %118 = vmatpush1.bf16.msra.mxu0 %v100
    %119 = vmatprep.subr.bf16.mxu0 0
    %120 = vmatpush1.bf16.msra.mxu0 %v101
    %121 = vmatprep.subr.bf16.mxu0 0
    %122 = vmatpush1.bf16.msra.mxu0 %v102
    %123 = vmatprep.subr.bf16.mxu0 0
    %124 = vmatpush1.bf16.msra.mxu0 %v103
    %125 = vmatprep.subr.bf16.mxu0 0
    %126 = vmatpush1.bf16.msra.mxu0 %v104
    %127 = vmatprep.subr.bf16.mxu0 0
    %128 = vmatpush1.bf16.msra.mxu0 %v105
    %129 = vmatprep.subr.bf16.mxu0 0
    %130 = vmatpush1.bf16.msra.mxu0 %v106
    %131 = vmatprep.subr.bf16.mxu0 0
    %132 = vmatpush1.bf16.msra.mxu0 0
    %133 = vmatprep.subr.bf16.mxu0 0
    %134 = vmatpush1.bf16.msra.mxu0 0
    %135 = vmatprep.subr.bf16.mxu0 0
    %136 = vmatpush1.bf16.msra.mxu0 0
    %137 = vmatprep.subr.bf16.mxu0 0
    %138 = vmatpush1.bf16.msra.mxu0 0
    %139 = vmatprep.subr.bf16.mxu0 0
    %140 = vmatpush1.bf16.msra.mxu0 0
    %141 = vmatprep.subr.bf16.mxu0 0
    %142 = vmatpush1.bf16.msra.mxu0 0
    %143 = vmatprep.subr.bf16.mxu0 0
    %144 = vmatpush1.bf16.msra.mxu0 0
    %145 = vmatprep.subr.bf16.mxu0 0
    %146 = vmatpush1.bf16.msra.mxu0 0
    %147 = vmatprep.mubr.bf16.mxu0 0
    %148 = vmatmul.mubr.bf16.gmra.mrb[0].mxu0 %v43
    %v149 = vpop.f32.mrb[0].mxu0
    %v150 = vadd.f32 %v65, %v149
    %v151 = vpop.f32.mrb[0].mxu0
    %v152 = vpop.f32.mrb[0].mxu0
    %v153 = vpop.f32.mrb[0].mxu0
    %154 = vdwg.mxu0
    %v155 = vmax.f32 %v150, 0.0
    %v156 = vpack.c.bf16 %v155, %v155
    %v157 = vld [vmem:[#allocation2] sm:$0xf]
    %v158 = vld [vmem:[#allocation2 + $0x4] sm:$0xf]
    %v159 = vld [vmem:[#allocation2 + $0x8] sm:$0xf]
    %v160 = vld [vmem:[#allocation2 + $0xc] sm:$0xf]
    %v161 = vld [vmem:[#allocation2 + $0x10] sm:$0xf]
    %v162 = vld [vmem:[#allocation2 + $0x14] sm:$0xf]
    %v163 = vld [vmem:[#allocation2 + $0x18] sm:$0xf]
    %v164 = vld [vmem:[#allocation2 + $0x1c] sm:$0xf]
    %v165 = vld [vmem:[#allocation2 + $0x20] sm:$0xf]
    %v166 = vld [vmem:[#allocation2 + $0x24] sm:$0xf]
    %v167 = vld [vmem:[#allocation2 + $0x28] sm:$0xf]
    %v168 = vld [vmem:[#allocation2 + $0x2c] sm:$0xf]
    %v169 = vld [vmem:[#allocation2 + $0x30] sm:$0xf]
    %v170 = vld [vmem:[#allocation2 + $0x34] sm:$0xf]
    %v171 = vld [vmem:[#allocation2 + $0x38] sm:$0xf]
    %v172 = vld [vmem:[#allocation2 + $0x3c] sm:$0xf]
    %v173 = vld [vmem:[%s4] sm:$0x1]
    %v175 = vlaneseq
    %v176 = vshrl.u32 %v175, 7
    %v177 = vsub.s32 0, %v176
    %v178 = vrot.slane %v173, %v177
    %v196 = vunpack.c.l.b16 %v157
    %v197 = vunpack.c.l.b16 %v158
    %v198 = vunpack.c.l.b16 %v159
    %v199 = vunpack.c.l.b16 %v160
    %v200 = vunpack.c.l.b16 %v161
    %v201 = vunpack.c.l.b16 %v162
    %v202 = vunpack.c.l.b16 %v163
    %v203 = vunpack.c.l.b16 %v164
    %v204 = vunpack.c.l.b16 %v165
    %v205 = vunpack.c.l.b16 %v166
    %v206 = vunpack.c.l.b16 %v167
    %v207 = vunpack.c.l.b16 %v168
    %v208 = vunpack.c.l.b16 %v169
    %v209 = vunpack.c.l.b16 %v170
    %v210 = vunpack.c.l.b16 %v171
    %v211 = vunpack.c.l.b16 %v172
    %v212 = vpack.c.b16 %v197, %v196
    %v213 = vpack.c.b16 %v199, %v198
    %v214 = vpack.c.b16 %v201, %v200
    %v215 = vpack.c.b16 %v203, %v202
    %v216 = vpack.c.b16 %v205, %v204
    %v217 = vpack.c.b16 %v207, %v206
    %v218 = vpack.c.b16 %v209, %v208
    %v219 = vpack.c.b16 %v211, %v210
    %228 = vmatprep.subr.bf16.mxu0 0
    %229 = vmatpush1.bf16.msra.mxu0 %v212
    %230 = vmatprep.subr.bf16.mxu0 0
    %231 = vmatpush1.bf16.msra.mxu0 %v213
    %232 = vmatprep.subr.bf16.mxu0 0
    %233 = vmatpush1.bf16.msra.mxu0 %v214
    %234 = vmatprep.subr.bf16.mxu0 0
    %235 = vmatpush1.bf16.msra.mxu0 %v215
    %236 = vmatprep.subr.bf16.mxu0 0
    %237 = vmatpush1.bf16.msra.mxu0 %v216
    %238 = vmatprep.subr.bf16.mxu0 0
    %239 = vmatpush1.bf16.msra.mxu0 %v217
    %240 = vmatprep.subr.bf16.mxu0 0
    %241 = vmatpush1.bf16.msra.mxu0 %v218
    %242 = vmatprep.subr.bf16.mxu0 0
    %243 = vmatpush1.bf16.msra.mxu0 %v219
    %244 = vmatprep.subr.bf16.mxu0 0
    %245 = vmatpush1.bf16.msra.mxu0 0
    %246 = vmatprep.subr.bf16.mxu0 0
    %247 = vmatpush1.bf16.msra.mxu0 0
    %248 = vmatprep.subr.bf16.mxu0 0
    %249 = vmatpush1.bf16.msra.mxu0 0
    %250 = vmatprep.subr.bf16.mxu0 0
    %251 = vmatpush1.bf16.msra.mxu0 0
    %252 = vmatprep.subr.bf16.mxu0 0
    %253 = vmatpush1.bf16.msra.mxu0 0
    %254 = vmatprep.subr.bf16.mxu0 0
    %255 = vmatpush1.bf16.msra.mxu0 0
    %256 = vmatprep.subr.bf16.mxu0 0
    %257 = vmatpush1.bf16.msra.mxu0 0
    %258 = vmatprep.subr.bf16.mxu0 0
    %259 = vmatpush1.bf16.msra.mxu0 0
    %260 = vmatprep.mubr.bf16.mxu0 0
    %261 = vmatmul.mubr.bf16.gmra.mrb[0].mxu0 %v156
    %v262 = vpop.f32.mrb[0].mxu0
    %v263 = vadd.f32 %v178, %v262
    %v264 = vpop.f32.mrb[0].mxu0
    %v265 = vpop.f32.mrb[0].mxu0
    %v266 = vpop.f32.mrb[0].mxu0
    %267 = vdwg.mxu0
    %v268 = vmax.f32 %v263, 0.0
    %v269 = vpack.c.bf16 %v268, %v268
    %v270 = vld [vmem:[%s5] sm:$0xf]
    %v271 = vld [vmem:[%s5 + $0x4] sm:$0xf]
    %v272 = vld [vmem:[%s5 + $0x8] sm:$0xf]
    %v273 = vld [vmem:[%s5 + $0xc] sm:$0xf]
    %v274 = vld [vmem:[%s5 + $0x10] sm:$0xf]
    %v275 = vld [vmem:[%s5 + $0x14] sm:$0xf]
    %v276 = vld [vmem:[%s5 + $0x18] sm:$0xf]
    %v277 = vld [vmem:[%s5 + $0x1c] sm:$0xf]
    %v278 = vld [vmem:[%s5 + $0x20] sm:$0xf]
    %v279 = vld [vmem:[%s5 + $0x24] sm:$0xf]
    %v280 = vld [vmem:[%s5 + $0x28] sm:$0xf]
    %v281 = vld [vmem:[%s5 + $0x2c] sm:$0xf]
    %v282 = vld [vmem:[%s5 + $0x30] sm:$0xf]
    %v283 = vld [vmem:[%s5 + $0x34] sm:$0xf]
    %v284 = vld [vmem:[%s5 + $0x38] sm:$0xf]
    %v285 = vld [vmem:[%s5 + $0x3c] sm:$0xf]
    %v286 = vld [vmem:[%s6] sm:$0x1]
    %v288 = vlaneseq
    %v289 = vshrl.u32 %v288, 7
    %v290 = vsub.s32 0, %v289
    %v291 = vrot.slane %v286, %v290
    %v309 = vunpack.c.l.b16 %v270
    %v310 = vunpack.c.l.b16 %v271
    %v311 = vunpack.c.l.b16 %v272
    %v312 = vunpack.c.l.b16 %v273
    %v313 = vunpack.c.l.b16 %v274
    %v314 = vunpack.c.l.b16 %v275
    %v315 = vunpack.c.l.b16 %v276
    %v316 = vunpack.c.l.b16 %v277
    %v317 = vunpack.c.l.b16 %v278
    %v318 = vunpack.c.l.b16 %v279
    %v319 = vunpack.c.l.b16 %v280
    %v320 = vunpack.c.l.b16 %v281
    %v321 = vunpack.c.l.b16 %v282
    %v322 = vunpack.c.l.b16 %v283
    %v323 = vunpack.c.l.b16 %v284
    %v324 = vunpack.c.l.b16 %v285
    %v325 = vpack.c.b16 %v310, %v309
    %v326 = vpack.c.b16 %v312, %v311
    %v327 = vpack.c.b16 %v314, %v313
    %v328 = vpack.c.b16 %v316, %v315
    %v329 = vpack.c.b16 %v318, %v317
    %v330 = vpack.c.b16 %v320, %v319
    %v331 = vpack.c.b16 %v322, %v321
    %v332 = vpack.c.b16 %v324, %v323
    %341 = vmatprep.subr.bf16.mxu0 0
    %342 = vmatpush1.bf16.msra.mxu0 %v325
    %343 = vmatprep.subr.bf16.mxu0 0
    %344 = vmatpush1.bf16.msra.mxu0 %v326
    %345 = vmatprep.subr.bf16.mxu0 0
    %346 = vmatpush1.bf16.msra.mxu0 %v327
    %347 = vmatprep.subr.bf16.mxu0 0
    %348 = vmatpush1.bf16.msra.mxu0 %v328
    %349 = vmatprep.subr.bf16.mxu0 0
    %350 = vmatpush1.bf16.msra.mxu0 %v329
    %351 = vmatprep.subr.bf16.mxu0 0
    %352 = vmatpush1.bf16.msra.mxu0 %v330
    %353 = vmatprep.subr.bf16.mxu0 0
    %354 = vmatpush1.bf16.msra.mxu0 %v331
    %355 = vmatprep.subr.bf16.mxu0 0
    %356 = vmatpush1.bf16.msra.mxu0 %v332
    %357 = vmatprep.subr.bf16.mxu0 0
    %358 = vmatpush1.bf16.msra.mxu0 0
    %359 = vmatprep.subr.bf16.mxu0 0
    %360 = vmatpush1.bf16.msra.mxu0 0
    %361 = vmatprep.subr.bf16.mxu0 0
    %362 = vmatpush1.bf16.msra.mxu0 0
    %363 = vmatprep.subr.bf16.mxu0 0
    %364 = vmatpush1.bf16.msra.mxu0 0
    %365 = vmatprep.subr.bf16.mxu0 0
    %366 = vmatpush1.bf16.msra.mxu0 0
    %367 = vmatprep.subr.bf16.mxu0 0
    %368 = vmatpush1.bf16.msra.mxu0 0
    %369 = vmatprep.subr.bf16.mxu0 0
    %370 = vmatpush1.bf16.msra.mxu0 0
    %371 = vmatprep.subr.bf16.mxu0 0
    %372 = vmatpush1.bf16.msra.mxu0 0
    %373 = vmatprep.mubr.bf16.mxu0 0
    %374 = vmatmul.mubr.bf16.gmra.mrb[0].mxu0 %v269
    %v375 = vpop.f32.mrb[0].mxu0
    %v376 = vadd.f32 %v291, %v375
    %v377 = vpop.f32.mrb[0].mxu0
    %v378 = vpop.f32.mrb[0].mxu0
    %v379 = vpop.f32.mrb[0].mxu0
    %380 = vdwg.mxu0
    %vm381 = vcmask 58368
    %382 = vst.msk [vmem:[#allocation5] sm:$0x3] %vm381, %v376
    // Predicated region
    $region34: #{tpu_custom_call.1} parent=1 // pred_check
      _
    $region35: #{tpu_custom_call.1} parent=1 // pred_check_branch
      %384 = sbr.rel (0) target = $region37
    $region36: #{tpu_custom_call.1} parent=1 // pred_region
      %s386 = ssub.s32 32, 32
      %387 = vsyncadd [#allocation4], %s386
      %s389 = sshll.u32 [#allocation5], 4
      %s390 = int_to_ptr.vmem [resolvable:$true] %s389
      %392 = dma.vmem_to_hbm [thread:$0]  %s390, 32, %s7, [#allocation4]
    $region37: #{tpu_custom_call.1} parent=1 // pred_fallthru
      _
    // Predicated region
    $region38: #{tpu_custom_call.1} parent=1 // pred_check
      _
    $region39: #{tpu_custom_call.1} parent=1 // pred_check_branch
      %394 = sbr.rel (0) target = $region41
    $region40: #{tpu_custom_call.1} parent=1 // pred_region
      %395 = dma.done [#allocation4], 32
    $region41: #{tpu_custom_call.1} parent=1 // pred_fallthru
      _
    %396 = vsyncpa [#allocation3], 1
    %397 = vsyncpa [#allocation4], 1

</llo_original>
